<compile_context>
chip_gen: v6e
topology: v6e:2x2x1
jax: 0.10.0
libtpu: 0.0.40
codegen_flags: <defaults>
</compile_context>

<pallas_src>
import jax
import jax.numpy as jnp
from jax import lax
from jax.experimental import pallas as pl
from jax.experimental.pallas import tpu as pltpu


# ---------------------------------------------------------------------------
# Tiling helpers
# ---------------------------------------------------------------------------
def _largest_divisor(n, target):
    target = max(1, min(n, target))
    for d in range(target, 0, -1):
        if n % d == 0:
            return d
    return n


def _pick_row_tile(m, target=512):
    """Row tile for the dense projection: full block if small, else a
    multiple-of-16 divisor (bf16 sublane packing) near `target`."""
    if m <= target:
        return m
    for d in range(target, 15, -1):
        if m % d == 0 and d % 16 == 0:
            return d
    return m


def _pick_batch_shards(b):
    """Leading 'parallel' batch-shard axis for the recurrence (v7x 2nd TC).
    Only shard when each shard keeps >= 8 sublane rows (layout-legal)."""
    return 2 if (b % 2 == 0 and (b // 2) % 8 == 0) else 1


def _vmem_limit(resident_bytes):
    # 2x for double-buffered pipelining + slack; never below a known-safe
    # 32 MiB, never above v7x physical VMEM (64 MiB).
    return int(min(64 << 20, max(32 << 20, 2 * resident_bytes + (2 << 20))))


# ---------------------------------------------------------------------------
# Kernel 1: hoisted input projection, gate-major output.
#   x (TM, I) bf16  @  W_ih^T (4, I, H) bf16  ->  xproj (4, TM, H) bf16
# ---------------------------------------------------------------------------
def _input_proj_kernel(x_ref, w_ref, y_ref):
    x = x_ref[...]
    for g in range(4):                     # static unroll over the 4 gates
        y_ref[g] = jnp.dot(
            x, w_ref[g], preferred_element_type=jnp.float32
        ).astype(y_ref.dtype)


# ---------------------------------------------------------------------------
# Kernel 2: LSTM recurrence over one time chunk + fused FC head.
#   Grid = (batch_shards, num_time_chunks); h/c live in VMEM scratch and
#   persist across the "arbitrary" time axis.
# ---------------------------------------------------------------------------
def _lstm_recurrence_kernel(xproj_ref, whh_ref, bias_ref, wfc_ref, bfc_ref,
                            y_ref, h_scr, c_scr):
    nb = pl.program_id(0)                  # batch shard
    ts = y_ref.shape[0]                    # time steps in this chunk (static)

    @pl.when(pl.program_id(1) == 0)
    def _():                               # zero-init carries once per shard
        h_scr[nb] = jnp.zeros(h_scr.shape[1:], jnp.float32)
        c_scr[nb] = jnp.zeros(c_scr.shape[1:], jnp.float32)

    # Hoist weight / bias loads out of the time loop (gate-major slabs).
    whh = [whh_ref[g] for g in range(4)]   # 4 x (H, H) bf16
    bias = [bias_ref[g] for g in range(4)] # 4 x (1, H) f32
    wfc = wfc_ref[...]                     # (H, OP) bf16, OP = padded to 128
    bfc = bfc_ref[...]                     # (1, OP) f32

    def step(t, carry):
        h, c = carry                       # (B, H) f32
        hb = h.astype(jnp.bfloat16)
        # Gate-major pre-activations: each gate is a clean (B, H) slab,
        # no lane slicing.  Bias added in f32 (xproj stored bf16 without it).
        pre = [
            jnp.dot(hb, whh[g], preferred_element_type=jnp.float32)
            + xproj_ref[g, t].astype(jnp.float32)
            + bias[g]
            for g in range(4)
        ]
        i_t = jax.nn.sigmoid(pre[0])
        f_t = jax.nn.sigmoid(pre[1])
        g_t = jnp.tanh(pre[2])
        o_t = jax.nn.sigmoid(pre[3])
        c_new = f_t * c + i_t * g_t        # f32 cell math (no bf16 VPU on v5e)
        h_new = o_t * jnp.tanh(c_new)
        # Fused FC head: lane-dense (B, OP) store, off the recurrent chain.
        y_ref[t] = (
            jnp.dot(h_new.astype(jnp.bfloat16), wfc,
                    preferred_element_type=jnp.float32) + bfc
        ).astype(y_ref.dtype)
        return (h_new, c_new)

    carry0 = (h_scr[nb], c_scr[nb])
    h_T, c_T = lax.fori_loop(0, ts, step, carry0, unroll=min(ts, 8))
    h_scr[nb] = h_T
    c_scr[nb] = c_T


# ---------------------------------------------------------------------------
# Wrapper
# ---------------------------------------------------------------------------
def lstm_rnn_forward(x, params, *, time_chunk=None):
    """x: (seq, batch, input_size) f32 -> (seq, batch, output_size) f32."""
    S, B, I = x.shape
    H = params["w_hh"].shape[1]
    O = params["w_fc"].shape[0]
    OP = ((O + 127) // 128) * 128          # lane-dense padded head width

    # ---- weight prep (layout plumbing only, done once) ----
    wih_g = params["w_ih"].reshape(4, H, I).transpose(0, 2, 1).astype(jnp.bfloat16)
    whh_g = params["w_hh"].reshape(4, H, H).transpose(0, 2, 1).astype(jnp.bfloat16)
    bias_g = (params["b_ih"] + params["b_hh"]).reshape(4, 1, H).astype(jnp.float32)
    wfc_pad = jnp.zeros((H, OP), jnp.bfloat16).at[:, :O].set(
        params["w_fc"].T.astype(jnp.bfloat16))
    bfc_pad = jnp.zeros((1, OP), jnp.float32).at[:, :O].set(
        params["b_fc"].reshape(1, O).astype(jnp.float32))

    # ---- (1) input projection for all time steps, gate-major, bf16 out ----
    M = S * B
    TM = _pick_row_tile(M)
    x2 = x.reshape(M, I).astype(jnp.bfloat16)
    proj_resident = TM * I * 2 + 4 * I * H * 2 + 4 * TM * H * 2
    xproj = pl.pallas_call(
        _input_proj_kernel,
        out_shape=jax.ShapeDtypeStruct((4, M, H), jnp.bfloat16),
        grid=(M // TM,),
        in_specs=[
            pl.BlockSpec((TM, I), lambda i: (i, 0)),
            pl.BlockSpec((4, I, H), lambda i: (0, 0, 0)),
        ],
        out_specs=pl.BlockSpec((4, TM, H), lambda i: (0, i, 0)),
        compiler_params=pltpu.CompilerParams(
            dimension_semantics=("parallel",),
            vmem_limit_bytes=_vmem_limit(proj_resident)),
    )(x2, wih_g)
    xproj = xproj.reshape(4, S, B, H)      # pure reshape, no transpose

    # ---- (2) recurrence + fused head, time-chunked grid, scratch carries ----
    if time_chunk is None:
        time_chunk = _largest_divisor(S, 32)
    TS = time_chunk
    assert S % TS == 0, "time_chunk must divide the sequence length"
    NB = _pick_batch_shards(B)
    Bs = B // NB
    NT = S // TS

    recur_resident = (
        4 * TS * Bs * H * 2        # xproj chunk (bf16)
        + TS * Bs * OP * 4         # y chunk (f32)
        + 4 * H * H * 2 + H * OP * 2 + 4 * H * 4 + OP * 4   # weights/biases
        + 2 * NB * Bs * H * 4      # h/c scratch
    )
    y_pad = pl.pallas_call(
        _lstm_recurrence_kernel,
        out_shape=jax.ShapeDtypeStruct((S, B, OP), jnp.float32),
        grid=(NB, NT),
        in_specs=[
            pl.BlockSpec((4, TS, Bs, H), lambda nb, ti: (0, ti, nb, 0)),
            pl.BlockSpec((4, H, H), lambda nb, ti: (0, 0, 0)),
            pl.BlockSpec((4, 1, H), lambda nb, ti: (0, 0, 0)),
            pl.BlockSpec((H, OP), lambda nb, ti: (0, 0)),
            pl.BlockSpec((1, OP), lambda nb, ti: (0, 0)),
        ],
        out_specs=pl.BlockSpec((TS, Bs, OP), lambda nb, ti: (ti, nb, 0)),
        scratch_shapes=[
            pltpu.VMEM((NB, Bs, H), jnp.float32),   # h carry
            pltpu.VMEM((NB, Bs, H), jnp.float32),   # c carry
        ],
        compiler_params=pltpu.CompilerParams(
            dimension_semantics=("parallel", "arbitrary"),
            vmem_limit_bytes=_vmem_limit(recur_resident)),
    )(xproj, whh_g, bias_g, wfc_pad, bfc_pad)

    return y_pad[..., :O]                  # drop lane padding of the head


# ---------------------------------------------------------------------------
# Pure-JAX f32 reference (mirrors PyTorch nn.LSTM + nn.Linear)
# ---------------------------------------------------------------------------
def _reference_forward(x, params):
    S, B, I = x.shape
    H = params["w_hh"].shape[1]
    w_ih, w_hh = params["w_ih"], params["w_hh"]
    b = params["b_ih"] + params["b_hh"]

    def step(carry, x_t):
        h, c = carry
        gates = x_t @ w_ih.T + h @ w_hh.T + b
        i_g = jax.nn.sigmoid(gates[:, 0 * H:1 * H])
        f_g = jax.nn.sigmoid(gates[:, 1 * H:2 * H])
        g_g = jnp.tanh(gates[:, 2 * H:3 * H])
        o_g = jax.nn.sigmoid(gates[:, 3 * H:4 * H])
        c_new = f_g * c + i_g * g_g
        h_new = o_g * jnp.tanh(c_new)
        return (h_new, c_new), h_new

    h0 = jnp.zeros((B, H), jnp.float32)
    c0 = jnp.zeros((B, H), jnp.float32)
    _, hs = jax.lax.scan(step, (h0, c0), x)          # (S, B, H)
    return hs @ params["w_fc"].T + params["b_fc"]    # (S, B, O)


def init_params(key, input_size, hidden_size, output_size):
    """Deterministic init matching PyTorch LSTM/Linear parameter shapes."""
    ks = jax.random.split(key, 6)
    k_lstm = 1.0 / jnp.sqrt(hidden_size)
    k_fc = 1.0 / jnp.sqrt(hidden_size)
    u = lambda k, shape, s: jax.random.uniform(k, shape, jnp.float32, -s, s)
    return {
        "w_ih": u(ks[0], (4 * hidden_size, input_size), k_lstm),
        "w_hh": u(ks[1], (4 * hidden_size, hidden_size), k_lstm),
        "b_ih": u(ks[2], (4 * hidden_size,), k_lstm),
        "b_hh": u(ks[3], (4 * hidden_size,), k_lstm),
        "w_fc": u(ks[4], (output_size, hidden_size), k_fc),
        "b_fc": u(ks[5], (output_size,), k_fc),
    }


if __name__ == "__main__":
    SEQ, BATCH = 8, 2
    INPUT_SIZE, HIDDEN_SIZE, OUTPUT_SIZE = 4, 32, 1

    key = jax.random.PRNGKey(0)
    k_x, k_p = jax.random.split(key)

    x = jax.random.normal(k_x, (SEQ, BATCH, INPUT_SIZE), jnp.float32)
    params = init_params(k_p, INPUT_SIZE, HIDDEN_SIZE, OUTPUT_SIZE)

    # time_chunk=4 -> two grid steps over the time axis, exercising the
    # scratch-carried h/c across chunk boundaries.
    y = jax.block_until_ready(lstm_rnn_forward(x, params, time_chunk=4))
    y_ref = jax.block_until_ready(_reference_forward(x, params))

    assert y.shape == (SEQ, BATCH, OUTPUT_SIZE)
    # bf16 matmul operands / bf16 xproj intermediate (f32 accumulation,
    # f32 cell math) vs. pure-f32 reference.
    assert jnp.allclose(y, y_ref, atol=5e-2, rtol=5e-2)

    print("KERNEL_OK")
</pallas_src>

<mosaic_0001>
module attributes {stable_mosaic.version = 11 : i64} {
  func.func @_input_proj_kernel(%arg0: i32, %arg1: memref<16x4xbf16, #tpu.memory_space<vmem>>, %arg2: memref<4x4x32xbf16, #tpu.memory_space<vmem>>, %arg3: memref<4x16x32xbf16, #tpu.memory_space<vmem>>) attributes {dimension_semantics = [#tpu.dimension_semantics<parallel>], iteration_bounds = array<i64: 1>, scalar_prefetch = 0 : i64, scratch_operands = 0 : i64, tpu.core_type = #tpu.core_type<tc>, window_params = [{transform_indices = @transform_0, window_bounds = array<i64: 16, 4>}, {pipeline_mode = #tpu.pipeline_mode<synchronous>, transform_indices = @transform_1, window_bounds = array<i64: 4, 4, 32>}, {transform_indices = @transform_2, window_bounds = array<i64: 4, 16, 32>}]} {
    %c0 = arith.constant 0 : index
    %c0_0 = arith.constant 0 : index
    %0 = vector.load %arg1[%c0, %c0_0] : memref<16x4xbf16, #tpu.memory_space<vmem>>, vector<16x4xbf16>
    %c0_1 = arith.constant 0 : index
    %c0_2 = arith.constant 0 : index
    %c0_3 = arith.constant 0 : index
    %1 = vector.load %arg2[%c0_1, %c0_2, %c0_3] : memref<4x4x32xbf16, #tpu.memory_space<vmem>>, vector<1x4x32xbf16>
    %2 = vector.shape_cast %1 : vector<1x4x32xbf16> to vector<4x32xbf16>
    %cst = arith.constant dense<0.000000e+00> : vector<16x32xf32>
    %3 = tpu.matmul %0, %2, %cst {dimension_numbers = #tpu.dot_dimension_numbers<[1], [0], [0], [1], [0, 0, 1, 1], [], []>} : vector<16x4xbf16>, vector<4x32xbf16>, vector<16x32xf32> -> vector<16x32xf32>
    %4 = arith.truncf %3 : vector<16x32xf32> to vector<16x32xbf16>
    %c0_4 = arith.constant 0 : index
    %c0_5 = arith.constant 0 : index
    %c0_6 = arith.constant 0 : index
    %5 = vector.load %arg3[%c0_4, %c0_5, %c0_6] : memref<4x16x32xbf16, #tpu.memory_space<vmem>>, vector<1x16x32xbf16>
    %6 = vector.shape_cast %5 : vector<1x16x32xbf16> to vector<16x32xbf16>
    %7 = vector.shape_cast %4 : vector<16x32xbf16> to vector<1x16x32xbf16>
    tpu.vector_store %arg3[%c0_4, %c0_5, %c0_6], %7 {strides = array<i32>} : memref<4x16x32xbf16, #tpu.memory_space<vmem>>, vector<1x16x32xbf16>,
    %c1 = arith.constant 1 : index
    %c0_7 = arith.constant 0 : index
    %c0_8 = arith.constant 0 : index
    %8 = vector.load %arg2[%c1, %c0_7, %c0_8] : memref<4x4x32xbf16, #tpu.memory_space<vmem>>, vector<1x4x32xbf16>
    %9 = vector.shape_cast %8 : vector<1x4x32xbf16> to vector<4x32xbf16>
    %cst_9 = arith.constant dense<0.000000e+00> : vector<16x32xf32>
    %10 = tpu.matmul %0, %9, %cst_9 {dimension_numbers = #tpu.dot_dimension_numbers<[1], [0], [0], [1], [0, 0, 1, 1], [], []>} : vector<16x4xbf16>, vector<4x32xbf16>, vector<16x32xf32> -> vector<16x32xf32>
    %11 = arith.truncf %10 : vector<16x32xf32> to vector<16x32xbf16>
    %c1_10 = arith.constant 1 : index
    %c0_11 = arith.constant 0 : index
    %c0_12 = arith.constant 0 : index
    %12 = vector.load %arg3[%c1_10, %c0_11, %c0_12] : memref<4x16x32xbf16, #tpu.memory_space<vmem>>, vector<1x16x32xbf16>
    %13 = vector.shape_cast %12 : vector<1x16x32xbf16> to vector<16x32xbf16>
    %14 = vector.shape_cast %11 : vector<16x32xbf16> to vector<1x16x32xbf16>
    tpu.vector_store %arg3[%c1_10, %c0_11, %c0_12], %14 {strides = array<i32>} : memref<4x16x32xbf16, #tpu.memory_space<vmem>>, vector<1x16x32xbf16>,
    %c2 = arith.constant 2 : index
    %c0_13 = arith.constant 0 : index
    %c0_14 = arith.constant 0 : index
    %15 = vector.load %arg2[%c2, %c0_13, %c0_14] : memref<4x4x32xbf16, #tpu.memory_space<vmem>>, vector<1x4x32xbf16>
    %16 = vector.shape_cast %15 : vector<1x4x32xbf16> to vector<4x32xbf16>
    %cst_15 = arith.constant dense<0.000000e+00> : vector<16x32xf32>
    %17 = tpu.matmul %0, %16, %cst_15 {dimension_numbers = #tpu.dot_dimension_numbers<[1], [0], [0], [1], [0, 0, 1, 1], [], []>} : vector<16x4xbf16>, vector<4x32xbf16>, vector<16x32xf32> -> vector<16x32xf32>
    %18 = arith.truncf %17 : vector<16x32xf32> to vector<16x32xbf16>
    %c2_16 = arith.constant 2 : index
    %c0_17 = arith.constant 0 : index
    %c0_18 = arith.constant 0 : index
    %19 = vector.load %arg3[%c2_16, %c0_17, %c0_18] : memref<4x16x32xbf16, #tpu.memory_space<vmem>>, vector<1x16x32xbf16>
    %20 = vector.shape_cast %19 : vector<1x16x32xbf16> to vector<16x32xbf16>
    %21 = vector.shape_cast %18 : vector<16x32xbf16> to vector<1x16x32xbf16>
    tpu.vector_store %arg3[%c2_16, %c0_17, %c0_18], %21 {strides = array<i32>} : memref<4x16x32xbf16, #tpu.memory_space<vmem>>, vector<1x16x32xbf16>,
    %c3 = arith.constant 3 : index
    %c0_19 = arith.constant 0 : index
    %c0_20 = arith.constant 0 : index
    %22 = vector.load %arg2[%c3, %c0_19, %c0_20] : memref<4x4x32xbf16, #tpu.memory_space<vmem>>, vector<1x4x32xbf16>
    %23 = vector.shape_cast %22 : vector<1x4x32xbf16> to vector<4x32xbf16>
    %cst_21 = arith.constant dense<0.000000e+00> : vector<16x32xf32>
    %24 = tpu.matmul %0, %23, %cst_21 {dimension_numbers = #tpu.dot_dimension_numbers<[1], [0], [0], [1], [0, 0, 1, 1], [], []>} : vector<16x4xbf16>, vector<4x32xbf16>, vector<16x32xf32> -> vector<16x32xf32>
    %25 = arith.truncf %24 : vector<16x32xf32> to vector<16x32xbf16>
    %c3_22 = arith.constant 3 : index
    %c0_23 = arith.constant 0 : index
    %c0_24 = arith.constant 0 : index
    %26 = vector.load %arg3[%c3_22, %c0_23, %c0_24] : memref<4x16x32xbf16, #tpu.memory_space<vmem>>, vector<1x16x32xbf16>
    %27 = vector.shape_cast %26 : vector<1x16x32xbf16> to vector<16x32xbf16>
    %28 = vector.shape_cast %25 : vector<16x32xbf16> to vector<1x16x32xbf16>
    tpu.vector_store %arg3[%c3_22, %c0_23, %c0_24], %28 {strides = array<i32>} : memref<4x16x32xbf16, #tpu.memory_space<vmem>>, vector<1x16x32xbf16>,
    return
  }
  func.func @transform_0(%arg0: i32) -> (i32, i32) {
    %c0_i32 = arith.constant 0 : i32
    %c0_i32_0 = arith.constant 0 : i32
    return %arg0, %c0_i32 : i32, i32
  }
  func.func @transform_1(%arg0: i32) -> (i32, i32, i32) {
    %c0_i32 = arith.constant 0 : i32
    %c0_i32_0 = arith.constant 0 : i32
    %c0_i32_1 = arith.constant 0 : i32
    %c0_i32_2 = arith.constant 0 : i32
    return %c0_i32, %c0_i32_0, %c0_i32_1 : i32, i32, i32
  }
  func.func @transform_2(%arg0: i32) -> (i32, i32, i32) {
    %c0_i32 = arith.constant 0 : i32
    %c0_i32_0 = arith.constant 0 : i32
    %c0_i32_1 = arith.constant 0 : i32
    return %c0_i32, %arg0, %c0_i32_0 : i32, i32, i32
  }
}

</mosaic_0001>

<llo_original>
// kernel: tpu_custom_call.1
$region0: #{tpu_custom_call.1}
  #allocation0 [shape = 'u32[]', space=smem, size = 0x4, offset = 0x4, fixed_abs, tag = 'smem constant byte address 0x4 - core index']
  #allocation1 [shape = 'u32[144,128]{1,0:T(1,128)}', space=vmem, size = 0x12000, scoped, tag = 'internal scratch']
  %s0 = inlined_call_operand.vmem [shape: bf16[16,4], index: 0, kind: input, shape index: {}]
  %s1 = inlined_call_operand.vmem [shape: bf16[4,4,32], index: 1, kind: input, shape index: {}]
  %s2 = inlined_call_operand.hbm [shape: bf16[4,16,32], index: 2, kind: output, shape index: {}]
  %s3 = sld [smem:[#allocation0]]
  $region18: #{tpu_custom_call.1} parent=0
    _
  %s5 = ssub.s32 1, %s3
  %s6 = scalar_select 0, %s5, %s3
  $region1: #{tpu_custom_call.1} parent=0
    #allocation2 [shape = 'u8[16384]{0}', space=vmem, size = 0x4000, scoped, tag = 'output window, operand 0, single buffered']
    #allocation3 [shape = 's32[1]{0}', space=sflag, size = 0x4, scoped, tag = 'scoped memory for tpu_custom_call.1']
    %7 = vsyncpa [#allocation3], 0
    // Predicated region
    $region2: #{tpu_custom_call.1} parent=1 // pred_check
      _
    $region3: #{tpu_custom_call.1} parent=1 // pred_check_branch
      %9 = sbr.rel (0) target = $region5
    $region4: #{tpu_custom_call.1} parent=1 // pred_region
      _
    $region5: #{tpu_custom_call.1} parent=1 // pred_fallthru
      _
    // Predicated region
    $region6: #{tpu_custom_call.1} parent=1 // pred_check
      _
    $region7: #{tpu_custom_call.1} parent=1 // pred_check_branch
      %11 = sbr.rel (0) target = $region9
    $region8: #{tpu_custom_call.1} parent=1 // pred_region
      _
    $region9: #{tpu_custom_call.1} parent=1 // pred_fallthru
      _
    %v13 = vld [vmem:[%s0] sm:$0xf]
    %v14 = vld [vmem:[%s0 + $0x4] sm:$0xf]
    %v15 = vld [vmem:[%s1] sm:$0x3]
    %v18 = vunpack.c.l.b16 %v13
    %v19 = vunpack.c.l.b16 %v14
    %v20 = vpack.c.b16 %v19, %v18
    %vm21 = vcmask 31744
    %v23 = vsel %vm21, %v20, 0
    %vm25 = vcmask 1041408
    %v27 = vsel %vm25, %v15, 0
    %29 = vmatprep.subr.bf16.mxu0 0
    %30 = vmatpush1.bf16.msra.mxu0 0
    %31 = vmatprep.subr.bf16.mxu0 0
    %32 = vmatpush1.bf16.msra.mxu0 0
    %33 = vmatprep.subr.bf16.mxu0 0
    %34 = vmatpush1.bf16.msra.mxu0 0
    %35 = vmatprep.subr.bf16.mxu0 0
    %36 = vmatpush1.bf16.msra.mxu0 0
    %37 = vmatprep.subr.bf16.mxu0 0
    %38 = vmatpush1.bf16.msra.mxu0 0
    %39 = vmatprep.subr.bf16.mxu0 0
    %40 = vmatpush1.bf16.msra.mxu0 0
    %41 = vmatprep.subr.bf16.mxu0 0
    %42 = vmatpush1.bf16.msra.mxu0 0
    %43 = vmatprep.subr.bf16.mxu0 0
    %44 = vmatpush1.bf16.msra.mxu0 %v27
    %45 = vmatprep.subr.bf16.mxu0 0
    %46 = vmatpush2.bf16.msra.mxu0 0
    %47 = vmatprep.subr.bf16.mxu0 0
    %48 = vmatpush2.bf16.msra.mxu0 0
    %49 = vmatprep.subr.bf16.mxu0 0
    %50 = vmatpush2.bf16.msra.mxu0 0
    %51 = vmatprep.subr.bf16.mxu0 0
    %52 = vmatpush2.bf16.msra.mxu0 0
    %53 = vmatprep.subr.bf16.mxu0 0
    %54 = vmatpush2.bf16.msra.mxu0 0
    %55 = vmatprep.subr.bf16.mxu0 0
    %56 = vmatpush2.bf16.msra.mxu0 0
    %57 = vmatprep.subr.bf16.mxu0 0
    %58 = vmatpush2.bf16.msra.mxu0 0
    %59 = vmatprep.subr.bf16.mxu0 0
    %60 = vmatpush2.bf16.msra.mxu0 0
    %61 = vmatprep.mubr.bf16.mxu0 0
    %62 = vmatmul.mubr.bf16.gmra.mxu0 %v23
    %v63 = vpop.f32.mrf.mxu0
    %v64 = vadd.f32 0.0, %v63
    %v65 = vpop.f32.mrf.mxu0
    %v66 = vpop.f32.mrf.mxu0
    %v67 = vadd.f32 0.0, %v66
    %v68 = vpop.f32.mrf.mxu0
    %69 = vdwg.mxu0
    %v70 = vpack.c.bf16 %v67, %v64
    %v72 = vunpack.c.l.b16 %v70
    %v73 = vunpack.c.h.b16 %v70
    %v74 = vpack.c.b16 %v72, %v72
    %v75 = vpack.c.b16 %v73, %v73
    %vm78 = vcmask 257024
    %79 = vst.msk [vmem:[#allocation2] sm:$0xf] %vm78, %v74
    %80 = vst.msk [vmem:[#allocation2 + $0x4] sm:$0xf] %vm78, %v75
    %s81 = scalar_lea.vmem %s1, 2
    %v82 = vld [vmem:[%s81] sm:$0x3]
    %v84 = vsel %vm25, %v82, 0
    %86 = vmatprep.subr.bf16.mxu0 0
    %87 = vmatpush1.bf16.msra.mxu0 0
    %88 = vmatprep.subr.bf16.mxu0 0
    %89 = vmatpush1.bf16.msra.mxu0 0
    %90 = vmatprep.subr.bf16.mxu0 0
    %91 = vmatpush1.bf16.msra.mxu0 0
    %92 = vmatprep.subr.bf16.mxu0 0
    %93 = vmatpush1.bf16.msra.mxu0 0
    %94 = vmatprep.subr.bf16.mxu0 0
    %95 = vmatpush1.bf16.msra.mxu0 0
    %96 = vmatprep.subr.bf16.mxu0 0
    %97 = vmatpush1.bf16.msra.mxu0 0
    %98 = vmatprep.subr.bf16.mxu0 0
    %99 = vmatpush1.bf16.msra.mxu0 0
    %100 = vmatprep.subr.bf16.mxu0 0
    %101 = vmatpush1.bf16.msra.mxu0 %v84
    %102 = vmatprep.subr.bf16.mxu0 0
    %103 = vmatpush2.bf16.msra.mxu0 0
    %104 = vmatprep.subr.bf16.mxu0 0
    %105 = vmatpush2.bf16.msra.mxu0 0
    %106 = vmatprep.subr.bf16.mxu0 0
    %107 = vmatpush2.bf16.msra.mxu0 0
    %108 = vmatprep.subr.bf16.mxu0 0
    %109 = vmatpush2.bf16.msra.mxu0 0
    %110 = vmatprep.subr.bf16.mxu0 0
    %111 = vmatpush2.bf16.msra.mxu0 0
    %112 = vmatprep.subr.bf16.mxu0 0
    %113 = vmatpush2.bf16.msra.mxu0 0
    %114 = vmatprep.subr.bf16.mxu0 0
    %115 = vmatpush2.bf16.msra.mxu0 0
    %116 = vmatprep.subr.bf16.mxu0 0
    %117 = vmatpush2.bf16.msra.mxu0 0
    %118 = vmatprep.mubr.bf16.mxu0 0
    %119 = vmatmul.mubr.bf16.gmra.mxu0 %v23
    %v120 = vpop.f32.mrf.mxu0
    %v121 = vadd.f32 0.0, %v120
    %v122 = vpop.f32.mrf.mxu0
    %v123 = vpop.f32.mrf.mxu0
    %v124 = vadd.f32 0.0, %v123
    %v125 = vpop.f32.mrf.mxu0
    %126 = vdwg.mxu0
    %v127 = vpack.c.bf16 %v124, %v121
    %v129 = vunpack.c.l.b16 %v127
    %v130 = vunpack.c.h.b16 %v127
    %v131 = vpack.c.b16 %v129, %v129
    %v132 = vpack.c.b16 %v130, %v130
    %s135 = scalar_lea.vmem [#allocation2], 8
    %136 = vst.msk [vmem:[%s135] sm:$0xf] %vm78, %v131
    %137 = vst.msk [vmem:[%s135 + $0x4] sm:$0xf] %vm78, %v132
    %s138 = scalar_lea.vmem %s1, 4
    %v139 = vld [vmem:[%s138] sm:$0x3]
    %v141 = vsel %vm25, %v139, 0
    %143 = vmatprep.subr.bf16.mxu0 0
    %144 = vmatpush1.bf16.msra.mxu0 0
    %145 = vmatprep.subr.bf16.mxu0 0
    %146 = vmatpush1.bf16.msra.mxu0 0
    %147 = vmatprep.subr.bf16.mxu0 0
    %148 = vmatpush1.bf16.msra.mxu0 0
    %149 = vmatprep.subr.bf16.mxu0 0
    %150 = vmatpush1.bf16.msra.mxu0 0
    %151 = vmatprep.subr.bf16.mxu0 0
    %152 = vmatpush1.bf16.msra.mxu0 0
    %153 = vmatprep.subr.bf16.mxu0 0
    %154 = vmatpush1.bf16.msra.mxu0 0
    %155 = vmatprep.subr.bf16.mxu0 0
    %156 = vmatpush1.bf16.msra.mxu0 0
    %157 = vmatprep.subr.bf16.mxu0 0
    %158 = vmatpush1.bf16.msra.mxu0 %v141
    %159 = vmatprep.subr.bf16.mxu0 0
    %160 = vmatpush2.bf16.msra.mxu0 0
    %161 = vmatprep.subr.bf16.mxu0 0
    %162 = vmatpush2.bf16.msra.mxu0 0
    %163 = vmatprep.subr.bf16.mxu0 0
    %164 = vmatpush2.bf16.msra.mxu0 0
    %165 = vmatprep.subr.bf16.mxu0 0
    %166 = vmatpush2.bf16.msra.mxu0 0
    %167 = vmatprep.subr.bf16.mxu0 0
    %168 = vmatpush2.bf16.msra.mxu0 0
    %169 = vmatprep.subr.bf16.mxu0 0
    %170 = vmatpush2.bf16.msra.mxu0 0
    %171 = vmatprep.subr.bf16.mxu0 0
    %172 = vmatpush2.bf16.msra.mxu0 0
    %173 = vmatprep.subr.bf16.mxu0 0
    %174 = vmatpush2.bf16.msra.mxu0 0
    %175 = vmatprep.mubr.bf16.mxu0 0
    %176 = vmatmul.mubr.bf16.gmra.mxu0 %v23
    %v177 = vpop.f32.mrf.mxu0
    %v178 = vadd.f32 0.0, %v177
    %v179 = vpop.f32.mrf.mxu0
    %v180 = vpop.f32.mrf.mxu0
    %v181 = vadd.f32 0.0, %v180
    %v182 = vpop.f32.mrf.mxu0
    %183 = vdwg.mxu0
    %v184 = vpack.c.bf16 %v181, %v178
    %v186 = vunpack.c.l.b16 %v184
    %v187 = vunpack.c.h.b16 %v184
    %v188 = vpack.c.b16 %v186, %v186
    %v189 = vpack.c.b16 %v187, %v187
    %s192 = scalar_lea.vmem [#allocation2], 16
    %193 = vst.msk [vmem:[%s192] sm:$0xf] %vm78, %v188
    %194 = vst.msk [vmem:[%s192 + $0x4] sm:$0xf] %vm78, %v189
    %s195 = scalar_lea.vmem %s1, 6
    %v196 = vld [vmem:[%s195] sm:$0x3]
    %v198 = vsel %vm25, %v196, 0
    %200 = vmatprep.subr.bf16.mxu0 0
    %201 = vmatpush1.bf16.msra.mxu0 0
    %202 = vmatprep.subr.bf16.mxu0 0
    %203 = vmatpush1.bf16.msra.mxu0 0
    %204 = vmatprep.subr.bf16.mxu0 0
    %205 = vmatpush1.bf16.msra.mxu0 0
    %206 = vmatprep.subr.bf16.mxu0 0
    %207 = vmatpush1.bf16.msra.mxu0 0
    %208 = vmatprep.subr.bf16.mxu0 0
    %209 = vmatpush1.bf16.msra.mxu0 0
    %210 = vmatprep.subr.bf16.mxu0 0
    %211 = vmatpush1.bf16.msra.mxu0 0
    %212 = vmatprep.subr.bf16.mxu0 0
    %213 = vmatpush1.bf16.msra.mxu0 0
    %214 = vmatprep.subr.bf16.mxu0 0
    %215 = vmatpush1.bf16.msra.mxu0 %v198
    %216 = vmatprep.subr.bf16.mxu0 0
    %217 = vmatpush2.bf16.msra.mxu0 0
    %218 = vmatprep.subr.bf16.mxu0 0
    %219 = vmatpush2.bf16.msra.mxu0 0
    %220 = vmatprep.subr.bf16.mxu0 0
    %221 = vmatpush2.bf16.msra.mxu0 0
    %222 = vmatprep.subr.bf16.mxu0 0
    %223 = vmatpush2.bf16.msra.mxu0 0
    %224 = vmatprep.subr.bf16.mxu0 0
    %225 = vmatpush2.bf16.msra.mxu0 0
    %226 = vmatprep.subr.bf16.mxu0 0
    %227 = vmatpush2.bf16.msra.mxu0 0
    %228 = vmatprep.subr.bf16.mxu0 0
    %229 = vmatpush2.bf16.msra.mxu0 0
    %230 = vmatprep.subr.bf16.mxu0 0
    %231 = vmatpush2.bf16.msra.mxu0 0
    %232 = vmatprep.mubr.bf16.mxu0 0
    %233 = vmatmul.mubr.bf16.gmra.mxu0 %v23
    %v234 = vpop.f32.mrf.mxu0
    %v235 = vadd.f32 0.0, %v234
    %v236 = vpop.f32.mrf.mxu0
    %v237 = vpop.f32.mrf.mxu0
    %v238 = vadd.f32 0.0, %v237
    %v239 = vpop.f32.mrf.mxu0
    %240 = vdwg.mxu0
    %v241 = vpack.c.bf16 %v238, %v235
    %v243 = vunpack.c.l.b16 %v241
    %v244 = vunpack.c.h.b16 %v241
    %v245 = vpack.c.b16 %v243, %v243
    %v246 = vpack.c.b16 %v244, %v244
    %s249 = scalar_lea.vmem [#allocation2], 24
    %250 = vst.msk [vmem:[%s249] sm:$0xf] %vm78, %v245
    %251 = vst.msk [vmem:[%s249 + $0x4] sm:$0xf] %vm78, %v246
    // Predicated region
    $region10: #{tpu_custom_call.1} parent=1 // pred_check
      _
    $region11: #{tpu_custom_call.1} parent=1 // pred_check_branch
      %253 = sbr.rel (0) target = $region13
    $region12: #{tpu_custom_call.1} parent=1 // pred_region
      %s255 = ssub.s32 512, 512
      %256 = vsyncadd [#allocation3], %s255
      %s257 = sshll.u32 [#allocation2], 4
      %s258 = int_to_ptr.vmem [resolvable:$true] %s257
      %263 = dma.vmem_to_hbm [thread:$0]  %s258, 512, %s2, [#allocation3], 64, 64, 4
    $region13: #{tpu_custom_call.1} parent=1 // pred_fallthru
      _
    // Predicated region
    $region14: #{tpu_custom_call.1} parent=1 // pred_check
      _
    $region15: #{tpu_custom_call.1} parent=1 // pred_check_branch
      %265 = sbr.rel (0) target = $region17
    $region16: #{tpu_custom_call.1} parent=1 // pred_region
      %266 = dma.done [#allocation3], 512
    $region17: #{tpu_custom_call.1} parent=1 // pred_fallthru
      _
    %267 = vsyncpa [#allocation3], 1

</llo_original>
